<compile_context>
chip_gen: v7x
topology: tpu7x:2x2x1
jax: 0.10.0
libtpu: 0.0.40
codegen_flags: <defaults>
</compile_context>

<pallas_src>
import functools

import jax
import jax.numpy as jnp
from jax.experimental import pallas as pl
from jax.experimental.pallas import tpu as pltpu


# ----------------------------------------------------------------------------
# Fast path: num_classes == 2, lane-dense interleaved layout.
# ----------------------------------------------------------------------------
def _focal_loss_c2_kernel(domain_ref, x_ref, out_ref, acc_ref, *,
                          gamma, batch, block_rows):
    # domain_ref: SMEM (1,) int32   -- class index (scalar prefetch)
    # x_ref:      VMEM (TR, 128)    -- flat logits, classes interleaved on lanes
    # out_ref:    VMEM (1, 1) f32   -- scalar mean loss
    # acc_ref:    VMEM (8, 128) f32 -- vector partial-sum accumulator
    pid = pl.program_id(0)

    @pl.when(pid == 0)
    def _():
        acc_ref[...] = jnp.zeros_like(acc_ref)

    x = x_ref[...].astype(jnp.float32)                    # (TR, 128)
    tr, lanes = x.shape
    d = domain_ref[0]

    # Neighbor lane (cyclic rotate by -1): even lanes hold x0 and now see x1
    # of the SAME example.  Odd lanes (and the lane-127 wrap) are garbage and
    # are masked out below.
    x_nb = pltpu.roll(x, shift=lanes - 1, axis=1)
    sign = (1 - 2 * d).astype(jnp.float32)                # +1 for d=0, -1 for d=1
    t = (x_nb - x) * sign                                 # = x_other - x_domain

    # log p = -softplus(t);  1 - p = sigmoid(t).  Share u = exp(-|t|).
    u = jnp.exp(-jnp.abs(t))
    softplus = jnp.maximum(t, 0.0) + jnp.log(1.0 + u)
    r = pl.reciprocal(1.0 + u, approx=False)
    one_minus_p = jnp.where(t >= 0.0, r, u * r)           # sigmoid(t)

    # (1 - p)**gamma : integer gamma -> repeated VPU multiplies (no pow).
    if float(gamma) == int(gamma) and gamma >= 0:
        w = jnp.ones_like(one_minus_p)
        for _ in range(int(gamma)):
            w = w * one_minus_p
    else:
        w = one_minus_p ** gamma                          # non-integer fallback
    loss = w * softplus                                   # = -(1-p)^g * log(p)

    # Keep only even lanes (class-0 slots == one value per example) inside the
    # valid flat range.  Handles odd lanes, explicit pad, and Pallas edge rows.
    lane = jax.lax.broadcasted_iota(jnp.int32, (tr, lanes), 1)
    row = jax.lax.broadcasted_iota(jnp.int32, (tr, lanes), 0)
    flat = (pid * block_rows + row) * lanes + lane
    valid = jnp.logical_and(lane % 2 == 0, flat < 2 * batch)
    masked = jnp.where(valid, loss, 0.0)

    # Fold into the (8,128) accumulator with pure VALU adds (no per-tile XLU
    # reduce on the loop-carried path).
    if tr % 8 == 0:
        acc_ref[...] += jnp.sum(masked.reshape(tr // 8, 8, lanes), axis=0)
    else:  # tiny single-tile batches (tr == full rows < 8)
        acc_ref[0:1, :] += jnp.sum(masked, axis=0, keepdims=True)

    @pl.when(pid == pl.num_programs(0) - 1)
    def _():
        out_ref[...] = jnp.sum(acc_ref[...], keepdims=True) * (1.0 / batch)


def _focal_loss_two_class(logits, domain_arr, *, gamma, block_rows=None):
    B, _ = logits.shape
    lane_w = 128

    # Free row-major reshape: flat[2*i] = class0 of example i, flat[2*i+1] = class1.
    flat = jnp.reshape(logits, (-1,))
    n_valid = flat.shape[0]                               # == 2 * B
    rem = n_valid % lane_w
    if rem:
        # Only for batches that are not a multiple of 64 (<128 extra elems).
        flat = jnp.pad(flat, (0, lane_w - rem))
    x2d = jnp.reshape(flat, (-1, lane_w))                 # (R, 128) lane-dense
    R = x2d.shape[0]

    if block_rows is None:
        # ~2 MiB f32 per tile: well past the per-grid-step overhead knee while
        # the double-buffered footprint fits default scoped VMEM on all chips.
        block_rows = 4096
    if R <= block_rows:
        tr = R                                            # full dim -> always legal
    else:
        tr = max(8, (block_rows // 8) * 8)                # multiple of 8 sublanes
    num_tiles = pl.cdiv(R, tr)

    kernel = functools.partial(_focal_loss_c2_kernel, gamma=gamma, batch=B,
                               block_rows=tr)

    grid_spec = pltpu.PrefetchScalarGridSpec(
        num_scalar_prefetch=1,
        grid=(num_tiles,),
        in_specs=[pl.BlockSpec((tr, lane_w), lambda i, d_ref: (i, 0))],
        out_specs=pl.BlockSpec((1, 1), lambda i, d_ref: (0, 0)),
        scratch_shapes=[pltpu.VMEM((8, lane_w), jnp.float32)],
    )

    out = pl.pallas_call(
        kernel,
        out_shape=jax.ShapeDtypeStruct((1, 1), jnp.float32),
        grid_spec=grid_spec,
        compiler_params=pltpu.CompilerParams(
            dimension_semantics=("arbitrary",),
            vmem_limit_bytes=32 * 1024 * 1024),
        cost_estimate=pl.CostEstimate(
            flops=30 * B,
            transcendentals=4 * B,
            bytes_accessed=x2d.size * x2d.dtype.itemsize + 8),
    )(domain_arr, x2d)
    return out[0, 0]


# ----------------------------------------------------------------------------
# Generic fallback: num_classes != 2 (row-tiled, correctness-first).
# TODO(synk): lane occupancy of the (TB, C) tile is poor for small C; a packed
# layout like the C==2 fast path could be added for other small C if needed.
# ----------------------------------------------------------------------------
def _focal_loss_generic_kernel(domain_ref, x_ref, out_ref, acc_ref, *,
                               gamma, batch, block_b):
    pid = pl.program_id(0)

    @pl.when(pid == 0)
    def _():
        acc_ref[...] = jnp.zeros_like(acc_ref)

    x = x_ref[...].astype(jnp.float32)                    # (TB, C)
    tb, c = x.shape
    d = domain_ref[0]

    col = jax.lax.broadcasted_iota(jnp.int32, (tb, c), 1)
    onehot = (col == d).astype(jnp.float32)
    x_sel = jnp.sum(x * onehot, axis=1, keepdims=True)    # (TB, 1)

    m = jnp.max(x, axis=1, keepdims=True)
    lse = m + jnp.log(jnp.sum(jnp.exp(x - m), axis=1, keepdims=True))
    log_p = x_sel - lse
    one_minus_p = 1.0 - jnp.exp(log_p)

    if float(gamma) == int(gamma) and gamma >= 0:
        w = jnp.ones_like(one_minus_p)
        for _ in range(int(gamma)):
            w = w * one_minus_p
    else:
        w = one_minus_p ** gamma
    loss = -w * log_p                                     # (TB, 1)

    row = jax.lax.broadcasted_iota(jnp.int32, (tb, 1), 0) + pid * block_b
    loss = jnp.where(row < batch, loss, 0.0)
    acc_ref[...] += jnp.sum(loss, keepdims=True)

    @pl.when(pid == pl.num_programs(0) - 1)
    def _():
        out_ref[...] = acc_ref[...] * (1.0 / batch)


def _focal_loss_generic(logits, domain_arr, *, gamma, block_b=None):
    B, C = logits.shape
    if block_b is None:
        block_b = B if B <= 1024 else 1024
    if block_b != B:
        block_b = max(8, (block_b // 8) * 8)
    num_tiles = pl.cdiv(B, block_b)

    kernel = functools.partial(_focal_loss_generic_kernel, gamma=gamma,
                               batch=B, block_b=block_b)
    grid_spec = pltpu.PrefetchScalarGridSpec(
        num_scalar_prefetch=1,
        grid=(num_tiles,),
        in_specs=[pl.BlockSpec((block_b, C), lambda i, d_ref: (i, 0))],
        out_specs=pl.BlockSpec((1, 1), lambda i, d_ref: (0, 0)),
        scratch_shapes=[pltpu.VMEM((1, 1), jnp.float32)],
    )
    out = pl.pallas_call(
        kernel,
        out_shape=jax.ShapeDtypeStruct((1, 1), jnp.float32),
        grid_spec=grid_spec,
        compiler_params=pltpu.CompilerParams(
            dimension_semantics=("arbitrary",),
            vmem_limit_bytes=32 * 1024 * 1024),
    )(domain_arr, logits)
    return out[0, 0]


# ----------------------------------------------------------------------------
# Public entry point.
# ----------------------------------------------------------------------------
def focal_loss(logits, domain, *, num_classes=2, gamma=2, block_rows=None):
    """Pallas equivalent of FocalLoss(num_classes, gamma).forward(logits, domain).

    block_rows: rows of the lane-packed (rows, 128) view for the C==2 fast
    path, or batch rows per tile for the generic path.  None -> auto.
    """
    B, C = logits.shape
    assert C == num_classes, "logit width must equal num_classes"
    domain_arr = jnp.asarray(domain, dtype=jnp.int32).reshape((1,))
    if C == 2:
        return _focal_loss_two_class(logits, domain_arr, gamma=gamma,
                                     block_rows=block_rows)
    return _focal_loss_generic(logits, domain_arr, gamma=gamma,
                               block_b=block_rows)


# ----------------------------------------------------------------------------
# Pure-JAX reference and self-test.
# ----------------------------------------------------------------------------
def _focal_loss_ref(logits, domain, *, num_classes, gamma):
    probs = jax.nn.softmax(logits.astype(jnp.float32), axis=1)
    label = jax.nn.one_hot(jnp.full((logits.shape[0],), domain), num_classes,
                           dtype=jnp.float32)
    p = jnp.sum(probs * label, axis=-1)
    return jnp.mean(-((1.0 - p) ** gamma) * jnp.log(p))


if __name__ == "__main__":
    key = jax.random.PRNGKey(0)
    k1, k2, k3, k4 = jax.random.split(key, 4)

    # Case 1: module defaults (num_classes=2, gamma=2), tiny batch (pad path).
    x1 = jax.random.normal(k1, (8, 2), dtype=jnp.float32)
    o1 = jax.block_until_ready(focal_loss(x1, 1, num_classes=2, gamma=2))
    r1 = _focal_loss_ref(x1, 1, num_classes=2, gamma=2)
    assert jnp.allclose(o1, r1, rtol=1e-5, atol=1e-5), (o1, r1)

    # Case 2: batch multiple of 64 -> completely pad-free reshape path.
    x2 = jax.random.normal(k2, (128, 2), dtype=jnp.float32)
    o2 = jax.block_until_ready(focal_loss(x2, 0, num_classes=2, gamma=2))
    r2 = _focal_loss_ref(x2, 0, num_classes=2, gamma=2)
    assert jnp.allclose(o2, r2, rtol=1e-5, atol=1e-5), (o2, r2)

    # Case 3: multi-tile grid, vector accumulator, ragged edge block, pad mask.
    x3 = jax.random.normal(k3, (3000, 2), dtype=jnp.float32)
    o3 = jax.block_until_ready(
        focal_loss(x3, 1, num_classes=2, gamma=2, block_rows=32))
    r3 = _focal_loss_ref(x3, 1, num_classes=2, gamma=2)
    assert jnp.allclose(o3, r3, rtol=1e-5, atol=1e-5), (o3, r3)

    # Case 4: generic num_classes != 2 fallback, multi-tile + ragged edge.
    x4 = jax.random.normal(k4, (40, 4), dtype=jnp.float32)
    o4 = jax.block_until_ready(
        focal_loss(x4, 2, num_classes=4, gamma=2, block_rows=16))
    r4 = _focal_loss_ref(x4, 2, num_classes=4, gamma=2)
    assert jnp.allclose(o4, r4, rtol=1e-5, atol=1e-5), (o4, r4)

    print("KERNEL_OK")
</pallas_src>

<mosaic_0001>
module attributes {stable_mosaic.version = 11 : i64} {
  func.func @_focal_loss_c2_kernel(%arg0: i32, %arg1: memref<1xi32, #tpu.memory_space<smem>>, %arg2: memref<1x128xf32, #tpu.memory_space<vmem>>, %arg3: memref<1x1xf32, #tpu.memory_space<vmem>>, %arg4: memref<8x128xf32, #tpu.memory_space<vmem>>) attributes {dimension_semantics = [#tpu.dimension_semantics<arbitrary>], iteration_bounds = array<i64: 1>, scalar_prefetch = 1 : i64, scratch_operands = 1 : i64, tpu.core_type = #tpu.core_type<tc>, window_params = [{transform_indices = @transform_0, window_bounds = array<i64: 1, 128>}, {pipeline_mode = #tpu.pipeline_mode<synchronous>, transform_indices = @transform_1, window_bounds = array<i64: 1, 1>}]} {
    %c0_i32 = arith.constant 0 : i32
    %0 = arith.cmpi eq, %arg0, %c0_i32 : i32
    %1 = arith.extui %0 : i1 to i32
    %c0_i32_0 = arith.constant 0 : i32
    %2 = arith.cmpi ne, %1, %c0_i32_0 : i32
    scf.if %2 {
      %cst_24 = arith.constant 0.000000e+00 : f32
      %72 = vector.broadcast %cst_24 : f32 to vector<8x128xf32>
      %c0_25 = arith.constant 0 : index
      %c0_26 = arith.constant 0 : index
      %73 = vector.load %arg4[%c0_25, %c0_26] : memref<8x128xf32, #tpu.memory_space<vmem>>, vector<8x128xf32>
      tpu.vector_store %arg4[%c0_25, %c0_26], %72 {strides = array<i32>} : memref<8x128xf32, #tpu.memory_space<vmem>>, vector<8x128xf32>,
    } else {
    }
    %c0 = arith.constant 0 : index
    %c0_1 = arith.constant 0 : index
    %3 = vector.load %arg2[%c0, %c0_1] : memref<1x128xf32, #tpu.memory_space<vmem>>, vector<1x128xf32>
    %c0_2 = arith.constant 0 : index
    %4 = memref.load %arg1[%c0_2] : memref<1xi32, #tpu.memory_space<smem>>
    %c127_i32 = arith.constant 127 : i32
    %5 = tpu.dynamic_rotate %3 by %c127_i32 dim 1 : vector<1x128xf32>, i32 -> vector<1x128xf32>
    %c2_i32 = arith.constant 2 : i32
    %6 = arith.muli %c2_i32, %4 : i32
    %c1_i32 = arith.constant 1 : i32
    %7 = arith.subi %c1_i32, %6 : i32
    %8 = arith.sitofp %7 : i32 to f32
    %9 = arith.subf %5, %3 : vector<1x128xf32>
    %10 = vector.broadcast %8 : f32 to vector<1x128xf32>
    %11 = arith.mulf %9, %10 : vector<1x128xf32>
    %12 = math.absf %11 : vector<1x128xf32>
    %cst = arith.constant 0.000000e+00 : f32
    %13 = vector.broadcast %cst : f32 to vector<1x128xf32>
    %14 = arith.subf %13, %12 : vector<1x128xf32>
    %15 = math.exp %14 : vector<1x128xf32>
    %cst_3 = arith.constant 0.000000e+00 : f32
    %16 = vector.broadcast %cst_3 : f32 to vector<1x128xf32>
    %17 = arith.maximumf %11, %16 : vector<1x128xf32>
    %cst_4 = arith.constant 1.000000e+00 : f32
    %18 = vector.broadcast %cst_4 : f32 to vector<1x128xf32>
    %19 = arith.addf %18, %15 : vector<1x128xf32>
    %20 = math.log %19 : vector<1x128xf32>
    %21 = arith.addf %17, %20 : vector<1x128xf32>
    %cst_5 = arith.constant 1.000000e+00 : f32
    %22 = vector.broadcast %cst_5 : f32 to vector<1x128xf32>
    %23 = arith.addf %22, %15 : vector<1x128xf32>
    %24 = tpu.reciprocal %23 : vector<1x128xf32> -> vector<1x128xf32>
    %cst_6 = arith.constant 0.000000e+00 : f32
    %25 = vector.broadcast %cst_6 : f32 to vector<1x128xf32>
    %26 = arith.cmpf oge, %11, %25 : vector<1x128xf32>
    %27 = arith.mulf %15, %24 : vector<1x128xf32>
    %28 = arith.select %26, %24, %27 : vector<1x128xi1>, vector<1x128xf32>
    %cst_7 = arith.constant 1.000000e+00 : f32
    %29 = vector.broadcast %cst_7 : f32 to vector<1x128xf32>
    %30 = arith.mulf %29, %28 : vector<1x128xf32>
    %31 = arith.mulf %30, %28 : vector<1x128xf32>
    %32 = arith.mulf %31, %21 : vector<1x128xf32>
    %33 = tpu.iota {dimensions = array<i32: 1>} : vector<1x128xi32>
    %34 = tpu.iota {dimensions = array<i32: 0>} : vector<1x128xi32>
    %c1_i32_8 = arith.constant 1 : i32
    %35 = arith.muli %arg0, %c1_i32_8 : i32
    %36 = vector.broadcast %35 : i32 to vector<1x128xi32>
    %37 = arith.addi %36, %34 : vector<1x128xi32>
    %c128_i32 = arith.constant 128 : i32
    %38 = vector.broadcast %c128_i32 : i32 to vector<1x128xi32>
    %39 = arith.muli %37, %38 : vector<1x128xi32>
    %40 = arith.addi %39, %33 : vector<1x128xi32>
    %c2_i32_9 = arith.constant 2 : i32
    %c0_i32_10 = arith.constant 0 : i32
    %41 = arith.cmpi eq, %c2_i32_9, %c0_i32_10 : i32
    %c1_i32_11 = arith.constant 1 : i32
    %42 = arith.select %41, %c1_i32_11, %c2_i32_9 : i32
    %43 = vector.broadcast %42 : i32 to vector<1x128xi32>
    %44 = arith.remsi %33, %43 : vector<1x128xi32>
    %c0_i32_12 = arith.constant 0 : i32
    %45 = vector.broadcast %c0_i32_12 : i32 to vector<1x128xi32>
    %46 = arith.cmpi ne, %44, %45 : vector<1x128xi32>
    %c0_i32_13 = arith.constant 0 : i32
    %47 = vector.broadcast %c0_i32_13 : i32 to vector<1x128xi32>
    %48 = arith.cmpi slt, %44, %47 : vector<1x128xi32>
    %c0_i32_14 = arith.constant 0 : i32
    %49 = arith.cmpi slt, %42, %c0_i32_14 : i32
    %50 = vector.broadcast %49 : i1 to vector<1x128xi1>
    %51 = vector.broadcast %50 : vector<1x128xi1> to vector<1x128xi1>
    %52 = arith.xori %48, %51 : vector<1x128xi1>
    %53 = arith.andi %52, %46 : vector<1x128xi1>
    %54 = vector.broadcast %42 : i32 to vector<1x128xi32>
    %55 = arith.addi %44, %54 : vector<1x128xi32>
    %56 = arith.select %53, %55, %44 : vector<1x128xi1>, vector<1x128xi32>
    %c0_i32_15 = arith.constant 0 : i32
    %57 = vector.broadcast %c0_i32_15 : i32 to vector<1x128xi32>
    %58 = arith.cmpi eq, %56, %57 : vector<1x128xi32>
    %c16_i32 = arith.constant 16 : i32
    %59 = vector.broadcast %c16_i32 : i32 to vector<1x128xi32>
    %60 = arith.cmpi slt, %40, %59 : vector<1x128xi32>
    %61 = arith.andi %58, %60 : vector<1x128xi1>
    %cst_16 = arith.constant 0.000000e+00 : f32
    %62 = vector.broadcast %cst_16 : f32 to vector<1x128xf32>
    %63 = arith.select %61, %32, %62 : vector<1x128xi1>, vector<1x128xf32>
    %c0_17 = arith.constant 0 : index
    %c0_18 = arith.constant 0 : index
    %64 = vector.load %arg4[%c0_17, %c0_18] : memref<8x128xf32, #tpu.memory_space<vmem>>, vector<1x128xf32>
    %cst_19 = arith.constant dense<0.000000e+00> : vector<128xf32>
    %65 = vector.multi_reduction <add>, %63, %cst_19 [0] : vector<1x128xf32> to vector<128xf32>
    %66 = vector.shape_cast %65 : vector<128xf32> to vector<1x128xf32>
    %67 = arith.addf %64, %66 : vector<1x128xf32>
    %c0_20 = arith.constant 0 : index
    %c0_21 = arith.constant 0 : index
    %68 = vector.load %arg4[%c0_20, %c0_21] : memref<8x128xf32, #tpu.memory_space<vmem>>, vector<1x128xf32>
    tpu.vector_store %arg4[%c0_20, %c0_21], %67 {strides = array<i32>} : memref<8x128xf32, #tpu.memory_space<vmem>>, vector<1x128xf32>,
    %c0_i32_22 = arith.constant 0 : i32
    %69 = arith.cmpi eq, %arg0, %c0_i32_22 : i32
    %70 = arith.extui %69 : i1 to i32
    %c0_i32_23 = arith.constant 0 : i32
    %71 = arith.cmpi ne, %70, %c0_i32_23 : i32
    scf.if %71 {
      %c0_24 = arith.constant 0 : index
      %c0_25 = arith.constant 0 : index
      %72 = vector.load %arg4[%c0_24, %c0_25] : memref<8x128xf32, #tpu.memory_space<vmem>>, vector<8x128xf32>
      %73 = vector.shape_cast %72 : vector<8x128xf32> to vector<1x8x128xf32>
      %cst_26 = arith.constant dense<0.000000e+00> : vector<1xf32>
      %74 = vector.multi_reduction <add>, %73, %cst_26 [1, 2] : vector<1x8x128xf32> to vector<1xf32>
      %75 = vector.shape_cast %74 : vector<1xf32> to vector<1x1x1xf32>
      %76 = vector.extract %75[0, 0, 0] : f32 from vector<1x1x1xf32>
      %77 = vector.broadcast %76 : f32 to vector<1x1xf32>
      %cst_27 = arith.constant 1.250000e-01 : f32
      %78 = vector.broadcast %cst_27 : f32 to vector<1x1xf32>
      %79 = arith.mulf %77, %78 : vector<1x1xf32>
      %c0_28 = arith.constant 0 : index
      %c0_29 = arith.constant 0 : index
      %80 = vector.load %arg3[%c0_28, %c0_29] : memref<1x1xf32, #tpu.memory_space<vmem>>, vector<1x1xf32>
      tpu.vector_store %arg3[%c0_28, %c0_29], %79 {strides = array<i32>} : memref<1x1xf32, #tpu.memory_space<vmem>>, vector<1x1xf32>,
    } else {
    }
    return
  }
  func.func @transform_0(%arg0: i32, %arg1: memref<1xi32, #tpu.memory_space<smem>>) -> (i32, i32) {
    %c0_i32 = arith.constant 0 : i32
    %c0_i32_0 = arith.constant 0 : i32
    return %arg0, %c0_i32 : i32, i32
  }
  func.func @transform_1(%arg0: i32, %arg1: memref<1xi32, #tpu.memory_space<smem>>) -> (i32, i32) {
    %c0_i32 = arith.constant 0 : i32
    %c0_i32_0 = arith.constant 0 : i32
    %c0_i32_1 = arith.constant 0 : i32
    return %c0_i32, %c0_i32_0 : i32, i32
  }
}

</mosaic_0001>

<llo_original>
// kernel: tpu_custom_call.1
$region0: #{tpu_custom_call.1}
  #allocation0 [shape = 'u32[]', space=smem, size = 0x4, offset = 0x4, fixed_abs, tag = 'smem constant byte address 0x4 - core index']
  #allocation1 [shape = 'u32[144,128]{1,0:T(1,128)}', space=vmem, size = 0x12000, scoped, tag = 'internal scratch']
  #allocation2 [shape = 'f32[8,128]{1,0:T(8,128)}', space=vmem, size = 0x1000, scoped, tag = 'scratch operand']
  #allocation3 [shape = 's32[1]{0}', space=sflag, size = 0x4, scoped, tag = 'scoped memory for tpu_custom_call.1']
  #allocation4 [shape = 's32[1]{0:T(128)S(6)}', space=smem, size = 0x200, scoped, tag = 'prefetched SMEM operand 0']
  %s0 = inlined_call_operand.<no memory space> [shape: s32[1], index: 0, kind: input, shape index: {}]
  %s1 = inlined_call_operand.vmem [shape: f32[1,128], index: 1, kind: input, shape index: {}]
  %s2 = inlined_call_operand.hbm [shape: f32[1,1], index: 2, kind: output, shape index: {}]
  %s3 = sld [smem:[#allocation0]]
  $region22: #{tpu_custom_call.1} parent=0
    _
  %s5 = ssub.s32 1, %s3
  %s6 = scalar_select 0, %s5, %s3
  %7 = sst [smem:[#allocation4]] %s0
  $region1: #{tpu_custom_call.1} parent=0
    #allocation5 [shape = 'u8[512]{0}', space=vmem, size = 0x400, scoped, tag = 'output window, operand 0, single buffered']
    #allocation6 [shape = 's32[1]{0}', space=sflag, size = 0x4, scoped, tag = 'scoped memory for tpu_custom_call.1']
    %8 = vsyncpa [#allocation6], 0
    // Predicated region
    $region2: #{tpu_custom_call.1} parent=1 // pred_check
      _
    $region3: #{tpu_custom_call.1} parent=1 // pred_check_branch
      %10 = sbr.rel (0) target = $region5
    $region4: #{tpu_custom_call.1} parent=1 // pred_region
      _
    $region5: #{tpu_custom_call.1} parent=1 // pred_fallthru
      _
    %p11 = scmp.eq.s32.totalorder 0, 0
    // Predicated region
    $region6: #{tpu_custom_call.1} parent=1 // pred_check
      %p12 = pneg %p11
    $region7: #{tpu_custom_call.1} parent=1 // pred_check_branch
      %14 = sbr.rel (%p12) target = $region9
    $region8: #{tpu_custom_call.1} parent=1 // pred_region
      %15 = vst [vmem:[#allocation2] sm:$0xff] 0.0
    $region9: #{tpu_custom_call.1} parent=1 // pred_fallthru
      _
    %v16 = vld [vmem:[%s1] sm:$0x1]
    %s17 = sld [smem:[#allocation4]]
    %18 = vrot.lane.b32.xlu0 %v16, 127
    %v19 = vpop.permute.xlu0 %18
    %s20 = smul.u32 %s17, 2
    %s21 = ssub.s32 1, %s20
    %s22 = scvt.s32.f32 %s21
    %v23 = vsub.f32 %v19, %v16
    %v24 = vstv %s22
    %v25 = vmul.f32 %v23, %v24
    %v26 = vand.u32 2147483647, %v25
    %v27 = vsub.f32 0.0, %v26
    %v28 = vmul.f32 %v27, 1.442695
    %v29 = vpow.pop %v28
    %v30 = vmax.f32 %v25, 0.0
    %v31 = vadd.f32 %v29, 1.0
    %v32 = vlog2.pop %v31
    %v33 = vmul.f32 %v32, 0.6931472
    %v34 = vadd.f32 %v30, %v33
    %v35 = vrcp.pop %v31
    %vm36 = vcmp.ge.f32.partialorder %v25, 0.0
    %v37 = vmul.f32 %v29, %v35
    %v38 = vsel %vm36, %v35, %v37
    %v39 = vmul.f32 %v38, %v38
    %v40 = vmul.f32 %v39, %v34
    %v41 = vlaneseq
    %v42 = vand.u32 %v41, 127
    %v43 = vlaneseq
    %v44 = vshrl.u32 %v43, 7
    %v45 = vstv 0
    %v46 = vadd.s32 %v45, %v44
    %v47 = vmul.u32 %v46, 128
    %v48 = vadd.s32 %v47, %v42
    %vm49 = vcmp.lt.s32.totalorder %v42, 0
    %v50 = vsub.s32 0, %v42
    %v51 = vsel %vm49, %v50, %v42
    %v52 = vshrl.u32 %v51, 1
    %v53 = vand.u32 %v51, 1
    %v54 = vsub.s32 0, %v53
    %v55 = vsel %vm49, %v54, %v53
    %vm56 = vcmp.ne.s32.totalorder %v55, 0
    %vm57 = vcmp.lt.s32.totalorder %v55, 0
    %vm58 = vmand %vm57, %vm56
    %v59 = vadd.s32 %v55, 2
    %v60 = vsel %vm58, %v59, %v55
    %vm61 = vcmp.eq.s32.totalorder %v60, 0
    %vm62 = vcmp.lt.s32.totalorder %v48, 16
    %vm63 = vmand %vm61, %vm62
    %v64 = vsel %vm63, %v40, 0.0
    %v65 = vld [vmem:[#allocation2] sm:$0x1]
    %v66 = vadd.f32 %v64, 0.0
    %v67 = vadd.f32 %v65, %v66
    %68 = vst [vmem:[#allocation2] sm:$0x1] %v67
    // Predicated region
    $region10: #{tpu_custom_call.1} parent=1 // pred_check
      %p69 = pneg %p11
    $region11: #{tpu_custom_call.1} parent=1 // pred_check_branch
      %71 = sbr.rel (%p69) target = $region13
    $region12: #{tpu_custom_call.1} parent=1 // pred_region
      %v72 = vld [vmem:[#allocation2] sm:$0xff]
      %73 = vadd.xlane.f32.xlu0 %v72
      %v74 = vpop.xlane.xlu0 %73
      %v75 = vrot.slane %v74, 4
      %v76 = vadd.f32 %v74, %v75
      %v77 = vrot.slane %v76, 2
      %v78 = vadd.f32 %v76, %v77
      %v79 = vrot.slane %v78, 1
      %v80 = vadd.f32 %v78, %v79
      %s81 = vtos %v80
      %v82 = vstv %s81
      %v83 = vmul.f32 %v82, 0.125
      %vm84 = vcmask 0
      %85 = vst.msk [vmem:[#allocation5] sm:$0x1] %vm84, %v83
    $region13: #{tpu_custom_call.1} parent=1 // pred_fallthru
      _
    // Predicated region
    $region14: #{tpu_custom_call.1} parent=1 // pred_check
      _
    $region15: #{tpu_custom_call.1} parent=1 // pred_check_branch
      %87 = sbr.rel (0) target = $region17
    $region16: #{tpu_custom_call.1} parent=1 // pred_region
      %s89 = ssub.s32 16, 16
      %90 = vsyncadd [#allocation6], %s89
      %s92 = sshll.u32 [#allocation5], 4
      %s93 = int_to_ptr.vmem [resolvable:$true] %s92
      %95 = dma.vmem_to_hbm [thread:$0]  %s93, 16, %s2, [#allocation6]
    $region17: #{tpu_custom_call.1} parent=1 // pred_fallthru
      _
    // Predicated region
    $region18: #{tpu_custom_call.1} parent=1 // pred_check
      _
    $region19: #{tpu_custom_call.1} parent=1 // pred_check_branch
      %97 = sbr.rel (0) target = $region21
    $region20: #{tpu_custom_call.1} parent=1 // pred_region
      %98 = dma.done [#allocation6], 16
    $region21: #{tpu_custom_call.1} parent=1 // pred_fallthru
      _
    %99 = vsyncpa [#allocation6], 1

</llo_original>
